<compile_context>
chip_gen: v5e
topology: v5e:2x2
jax: 0.10.0
libtpu: 0.0.40
codegen_flags: <defaults>
</compile_context>

<pallas_src>
import jax
import jax.numpy as jnp
from jax.experimental import pallas as pl
from jax.experimental.pallas import tpu as pltpu


def senet_kernel(x_ref, w1_ref, b1_ref, w2_ref, b2_ref, o_ref):
    # x_ref block: (TB, N, C) in the native (possibly bf16) dtype.
    n_tokens = x_ref.shape[1]
    # Squeeze: mean over tokens.  Accumulate in f32 without materializing a
    # full-block f32 copy of x (keeps VMEM + VALU pressure low).
    mean = jnp.sum(x_ref[...], axis=1, dtype=jnp.float32) * (1.0 / n_tokens)
    # Excitation MLP (tiny, f32): Linear -> ReLU -> Linear -> Sigmoid.
    h = jnp.dot(mean, w1_ref[...].astype(jnp.float32),
                preferred_element_type=jnp.float32)
    h = jnp.maximum(h + b1_ref[...].astype(jnp.float32), 0.0)          # (TB, H)
    g = jnp.dot(h, w2_ref[...].astype(jnp.float32),
                preferred_element_type=jnp.float32)
    gate = jax.nn.sigmoid(g + b2_ref[...].astype(jnp.float32))         # (TB, C)
    # Scale: broadcast gate over tokens; elementwise math in the native dtype.
    o_ref[...] = x_ref[...] * gate.astype(o_ref.dtype)[:, None, :]


def _vmem_capacity_bytes():
    """Physical VMEM on this chip; conservative 64 MiB (v7x) fallback."""
    try:
        cap = getattr(pltpu.get_tpu_info(), "vmem_capacity_bytes", None)
        if cap:
            return int(cap)
    except Exception:
        pass
    return 64 * 1024 * 1024


def _num_tensorcores():
    """Best-effort TensorCores per device (v7x / v4 / v5p expose 2)."""
    try:
        kind = (jax.local_devices()[0].device_kind or "").lower()
    except Exception:
        kind = ""
    return 2 if any(tag in kind for tag in ("v7", "v4", "v5p")) else 1


def _pick_tb(B, N, C, itemsize, num_cores, target_block_bytes):
    """Batch rows per block: ~target_block_bytes of x per buffer (a few MiB
    already saturates HBM), capped so multi-TensorCore chips keep a deep,
    balanced parallel grid.  No divisor-of-B requirement (grid uses cdiv)."""
    row_bytes = max(1, N * C * itemsize)
    tb = max(1, int(target_block_bytes) // row_bytes)
    tb = min(tb, B)
    if num_cores > 1:
        min_steps = 2 * num_cores                   # >= 2 steps per core
        if B >= min_steps:
            tb = min(tb, max(1, B // min_steps))
        elif B >= num_cores:
            tb = min(tb, max(1, B // num_cores))
    return max(1, tb)


def senet_forward(x, w1, b1, w2, b2, *, tb=None, target_block_bytes=4 << 20):
    """x: (B, N, C); w1: (C, H); b1: (1, H); w2: (H, C); b2: (1, C)."""
    B, N, C = x.shape
    H = w1.shape[1]

    # Lane-dense output stores: pad C up to a multiple of 128 (sliced back
    # afterwards).  Padded channels are zero in x / w1 rows / w2+b2 cols, so
    # they contribute nothing to the real outputs.
    LANE = 128
    C_pad = C if C % LANE == 0 else ((C + LANE - 1) // LANE) * LANE
    if C_pad != C:
        dc = C_pad - C
        x = jnp.pad(x, ((0, 0), (0, 0), (0, dc)))
        w1 = jnp.pad(w1, ((0, dc), (0, 0)))
        w2 = jnp.pad(w2, ((0, 0), (0, dc)))
        b2 = jnp.pad(b2, ((0, 0), (0, dc)))

    itemsize = jnp.dtype(x.dtype).itemsize
    num_cores = _num_tensorcores()
    if tb is None:
        tb = _pick_tb(B, N, C_pad, itemsize, num_cores, target_block_bytes)
    tb = max(1, min(int(tb), B))
    grid = (pl.cdiv(B, tb),)

    weight_bytes = sum(int(a.size) * jnp.dtype(a.dtype).itemsize
                       for a in (w1, b1, w2, b2))
    block_bytes = tb * N * C_pad * itemsize

    # VMEM budget: double-buffered in/out x blocks + weights (counted twice to
    # stay conservative) + 8 MiB headroom for compiler scratch.  Clamp >= 8 MiB
    # below physical capacity (64 MiB/core on v7x, 128 MiB on v5e/v6e).
    # TODO(synk): if a single (1, N, C) row ever exceeds this clamp, N itself
    # must be tiled with a two-pass (mean then scale) scheme.
    cap = _vmem_capacity_bytes()
    need = 4 * block_bytes + 2 * weight_bytes + (8 << 20)
    vmem_limit = int(max(32 << 20, min(need, cap - (8 << 20))))

    # Advisory cost: memory-bound (read x + write out), trivial FLOPs.
    x_bytes = B * N * C_pad * itemsize
    cost = pl.CostEstimate(
        flops=4 * B * C_pad * H + 2 * B * N * C_pad,
        transcendentals=B * C_pad,
        bytes_accessed=2 * x_bytes + weight_bytes,
    )

    const1 = pl.Buffered(1)   # constant index_map -> never re-fetched
    out = pl.pallas_call(
        senet_kernel,
        out_shape=jax.ShapeDtypeStruct((B, N, C_pad), x.dtype),
        grid_spec=pltpu.PrefetchScalarGridSpec(
            num_scalar_prefetch=0,
            grid=grid,
            in_specs=[
                # NOTE: bump to pipeline_mode=pl.Buffered(3) if a profile
                # shows exposed input DMA (kernel is purely HBM-bound).
                pl.BlockSpec((tb, N, C_pad), lambda b: (b, 0, 0)),
                pl.BlockSpec((C_pad, H), lambda b: (0, 0), pipeline_mode=const1),
                pl.BlockSpec((1, H), lambda b: (0, 0), pipeline_mode=const1),
                pl.BlockSpec((H, C_pad), lambda b: (0, 0), pipeline_mode=const1),
                pl.BlockSpec((1, C_pad), lambda b: (0, 0), pipeline_mode=const1),
            ],
            out_specs=pl.BlockSpec((tb, N, C_pad), lambda b: (b, 0, 0)),
        ),
        compiler_params=pltpu.CompilerParams(
            dimension_semantics=("parallel",),
            vmem_limit_bytes=vmem_limit,
        ),
        cost_estimate=cost,
    )(x, w1, b1, w2, b2)

    if C_pad != C:
        out = out[:, :, :C]
    return out


def senet_reference(x, w1, b1, w2, b2):
    """Pure-JAX reference mirroring the PyTorch forward exactly."""
    branch = jnp.mean(x, axis=1)                              # (B, C)
    h = jnp.maximum(branch @ w1 + b1, 0.0)                    # (B, H)
    gate = jax.nn.sigmoid(h @ w2 + b2)                        # (B, C)
    return x * gate[:, None, :]                               # (B, N, C)


if __name__ == "__main__":
    # small shapes consistent with the module: tokens x channels
    B, N, C = 2, 8, 32
    ratio = 0.25
    H = int(C * ratio)                                        # 8

    key = jax.random.PRNGKey(0)
    kx, k1, k2, k3, k4, kx2 = jax.random.split(key, 6)

    x = jax.random.normal(kx, (B, N, C), dtype=jnp.float32)
    # nn.Linear(channel, channel*ratio): weight (H, C), bias (H,)
    # stored here pre-transposed as (C, H) so the kernel does mean @ w1.
    w1 = jax.random.normal(k1, (C, H), dtype=jnp.float32) * 0.1
    b1 = jax.random.normal(k2, (1, H), dtype=jnp.float32) * 0.1
    # nn.Linear(channel*ratio, channel): weight (C, H) -> stored as (H, C)
    w2 = jax.random.normal(k3, (H, C), dtype=jnp.float32) * 0.1
    b2 = jax.random.normal(k4, (1, C), dtype=jnp.float32) * 0.1

    out = jax.block_until_ready(senet_forward(x, w1, b1, w2, b2))
    ref = senet_reference(x, w1, b1, w2, b2)
    assert out.shape == (B, N, C), out.shape
    assert jnp.allclose(out, ref, atol=1e-5, rtol=1e-5), float(
        jnp.max(jnp.abs(out - ref)))

    # Ragged-grid path (B not divisible by tb): exercises pl.cdiv + Pallas
    # masking of the last batch block (per-row compute, discarded padding).
    B2 = 5
    x2 = jax.random.normal(kx2, (B2, N, C), dtype=jnp.float32)
    out2 = jax.block_until_ready(senet_forward(x2, w1, b1, w2, b2, tb=2))
    ref2 = senet_reference(x2, w1, b1, w2, b2)
    assert out2.shape == (B2, N, C), out2.shape
    assert jnp.allclose(out2, ref2, atol=1e-5, rtol=1e-5), float(
        jnp.max(jnp.abs(out2 - ref2)))

    print("KERNEL_OK")
</pallas_src>

<mosaic_0001>
module attributes {stable_mosaic.version = 11 : i64} {
  func.func @senet_kernel(%arg0: i32, %arg1: memref<2x8x128xf32, #tpu.memory_space<vmem>>, %arg2: memref<128x8xf32, #tpu.memory_space<vmem>>, %arg3: memref<1x8xf32, #tpu.memory_space<vmem>>, %arg4: memref<8x128xf32, #tpu.memory_space<vmem>>, %arg5: memref<1x128xf32, #tpu.memory_space<vmem>>, %arg6: memref<2x8x128xf32, #tpu.memory_space<vmem>>) attributes {dimension_semantics = [#tpu.dimension_semantics<parallel>], iteration_bounds = array<i64: 1>, scalar_prefetch = 0 : i64, scratch_operands = 0 : i64, tpu.core_type = #tpu.core_type<tc>, window_params = [{transform_indices = @transform_0, window_bounds = array<i64: 2, 8, 128>}, {pipeline_mode = #tpu.pipeline_mode<synchronous>, transform_indices = @transform_1, window_bounds = array<i64: 128, 8>}, {pipeline_mode = #tpu.pipeline_mode<synchronous>, transform_indices = @transform_2, window_bounds = array<i64: 1, 8>}, {pipeline_mode = #tpu.pipeline_mode<synchronous>, transform_indices = @transform_3, window_bounds = array<i64: 8, 128>}, {pipeline_mode = #tpu.pipeline_mode<synchronous>, transform_indices = @transform_4, window_bounds = array<i64: 1, 128>}, {transform_indices = @transform_5, window_bounds = array<i64: 2, 8, 128>}]} {
    %c0 = arith.constant 0 : index
    %c0_0 = arith.constant 0 : index
    %c0_1 = arith.constant 0 : index
    %0 = vector.load %arg1[%c0, %c0_0, %c0_1] : memref<2x8x128xf32, #tpu.memory_space<vmem>>, vector<2x8x128xf32>
    %cst = arith.constant dense<0.000000e+00> : vector<2x128xf32>
    %1 = vector.multi_reduction <add>, %0, %cst [1] : vector<2x8x128xf32> to vector<2x128xf32>
    %cst_2 = arith.constant 1.250000e-01 : f32
    %2 = vector.broadcast %cst_2 : f32 to vector<2x128xf32>
    %3 = arith.mulf %1, %2 : vector<2x128xf32>
    %c0_3 = arith.constant 0 : index
    %c0_4 = arith.constant 0 : index
    %4 = vector.load %arg2[%c0_3, %c0_4] : memref<128x8xf32, #tpu.memory_space<vmem>>, vector<128x8xf32>
    %cst_5 = arith.constant dense<0.000000e+00> : vector<2x8xf32>
    %5 = tpu.matmul %3, %4, %cst_5 {dimension_numbers = #tpu.dot_dimension_numbers<[1], [0], [0], [1], [0, 0, 1, 1], [], []>} : vector<2x128xf32>, vector<128x8xf32>, vector<2x8xf32> -> vector<2x8xf32>
    %c0_6 = arith.constant 0 : index
    %c0_7 = arith.constant 0 : index
    %6 = vector.load %arg3[%c0_6, %c0_7] : memref<1x8xf32, #tpu.memory_space<vmem>>, vector<1x8xf32>
    %7 = vector.broadcast %6 : vector<1x8xf32> to vector<2x8xf32>
    %8 = arith.addf %5, %7 : vector<2x8xf32>
    %cst_8 = arith.constant 0.000000e+00 : f32
    %9 = vector.broadcast %cst_8 : f32 to vector<2x8xf32>
    %10 = arith.maximumf %8, %9 : vector<2x8xf32>
    %c0_9 = arith.constant 0 : index
    %c0_10 = arith.constant 0 : index
    %11 = vector.load %arg4[%c0_9, %c0_10] : memref<8x128xf32, #tpu.memory_space<vmem>>, vector<8x128xf32>
    %cst_11 = arith.constant dense<0.000000e+00> : vector<2x128xf32>
    %12 = tpu.matmul %10, %11, %cst_11 {dimension_numbers = #tpu.dot_dimension_numbers<[1], [0], [0], [1], [0, 0, 1, 1], [], []>} : vector<2x8xf32>, vector<8x128xf32>, vector<2x128xf32> -> vector<2x128xf32>
    %c0_12 = arith.constant 0 : index
    %c0_13 = arith.constant 0 : index
    %13 = vector.load %arg5[%c0_12, %c0_13] : memref<1x128xf32, #tpu.memory_space<vmem>>, vector<1x128xf32>
    %14 = vector.broadcast %13 : vector<1x128xf32> to vector<2x128xf32>
    %15 = arith.addf %12, %14 : vector<2x128xf32>
    %16 = arith.negf %15 : vector<2x128xf32>
    %17 = math.exp %16 : vector<2x128xf32>
    %cst_14 = arith.constant 1.000000e+00 : f32
    %18 = vector.broadcast %cst_14 : f32 to vector<2x128xf32>
    %19 = arith.addf %18, %17 : vector<2x128xf32>
    %20 = arith.divf %18, %19 : vector<2x128xf32>
    %c0_15 = arith.constant 0 : index
    %c0_16 = arith.constant 0 : index
    %c0_17 = arith.constant 0 : index
    %21 = vector.load %arg1[%c0_15, %c0_16, %c0_17] : memref<2x8x128xf32, #tpu.memory_space<vmem>>, vector<2x8x128xf32>
    %22 = vector.shape_cast %20 : vector<2x128xf32> to vector<2x1x128xf32>
    %23 = vector.broadcast %22 : vector<2x1x128xf32> to vector<2x8x128xf32>
    %24 = arith.mulf %21, %23 : vector<2x8x128xf32>
    %c0_18 = arith.constant 0 : index
    %c0_19 = arith.constant 0 : index
    %c0_20 = arith.constant 0 : index
    %25 = vector.load %arg6[%c0_18, %c0_19, %c0_20] : memref<2x8x128xf32, #tpu.memory_space<vmem>>, vector<2x8x128xf32>
    tpu.vector_store %arg6[%c0_18, %c0_19, %c0_20], %24 {strides = array<i32>} : memref<2x8x128xf32, #tpu.memory_space<vmem>>, vector<2x8x128xf32>,
    return
  }
  func.func @transform_0(%arg0: i32) -> (i32, i32, i32) {
    %c0_i32 = arith.constant 0 : i32
    %c0_i32_0 = arith.constant 0 : i32
    %c0_i32_1 = arith.constant 0 : i32
    return %arg0, %c0_i32, %c0_i32_0 : i32, i32, i32
  }
  func.func @transform_1(%arg0: i32) -> (i32, i32) {
    %c0_i32 = arith.constant 0 : i32
    %c0_i32_0 = arith.constant 0 : i32
    %c0_i32_1 = arith.constant 0 : i32
    return %c0_i32, %c0_i32_0 : i32, i32
  }
  func.func @transform_2(%arg0: i32) -> (i32, i32) {
    %c0_i32 = arith.constant 0 : i32
    %c0_i32_0 = arith.constant 0 : i32
    %c0_i32_1 = arith.constant 0 : i32
    return %c0_i32, %c0_i32_0 : i32, i32
  }
  func.func @transform_3(%arg0: i32) -> (i32, i32) {
    %c0_i32 = arith.constant 0 : i32
    %c0_i32_0 = arith.constant 0 : i32
    %c0_i32_1 = arith.constant 0 : i32
    return %c0_i32, %c0_i32_0 : i32, i32
  }
  func.func @transform_4(%arg0: i32) -> (i32, i32) {
    %c0_i32 = arith.constant 0 : i32
    %c0_i32_0 = arith.constant 0 : i32
    %c0_i32_1 = arith.constant 0 : i32
    return %c0_i32, %c0_i32_0 : i32, i32
  }
  func.func @transform_5(%arg0: i32) -> (i32, i32, i32) {
    %c0_i32 = arith.constant 0 : i32
    %c0_i32_0 = arith.constant 0 : i32
    %c0_i32_1 = arith.constant 0 : i32
    return %arg0, %c0_i32, %c0_i32_0 : i32, i32, i32
  }
}

</mosaic_0001>

<llo_original>
// kernel: tpu_custom_call.1
$region0: #{tpu_custom_call.1}
  #allocation0 [shape = 'u32[]', space=smem, size = 0x4, offset = 0x4, fixed_abs, tag = 'smem constant byte address 0x4 - core index']
  #allocation1 [shape = 'u32[72,128]{1,0:T(1,128)}', space=vmem, size = 0x9000, scoped, tag = 'internal scratch']
  %s0 = inlined_call_operand.vmem [shape: f32[2,8,128], index: 0, kind: input, shape index: {}]
  %s1 = inlined_call_operand.vmem [shape: f32[128,8], index: 1, kind: input, shape index: {}]
  %s2 = inlined_call_operand.vmem [shape: f32[1,8], index: 2, kind: input, shape index: {}]
  %s3 = inlined_call_operand.vmem [shape: f32[8,128], index: 3, kind: input, shape index: {}]
  %s4 = inlined_call_operand.vmem [shape: f32[1,128], index: 4, kind: input, shape index: {}]
  %s5 = inlined_call_operand.hbm [shape: f32[2,8,128], index: 5, kind: output, shape index: {}]
  %s6 = sld [smem:[#allocation0]]
  $region30: #{tpu_custom_call.1} parent=0
    _
  %s8 = ssub.s32 1, %s6
  %s9 = scalar_select 0, %s8, %s6
  $region1: #{tpu_custom_call.1} parent=0
    #allocation2 [shape = 'u8[8192]{0}', space=vmem, size = 0x2000, scoped, tag = 'output window, operand 0, single buffered']
    #allocation3 [shape = 's32[1]{0}', space=sflag, size = 0x4, scoped, tag = 'scoped memory for tpu_custom_call.1']
    %10 = vsyncpa [#allocation3], 0
    // Predicated region
    $region2: #{tpu_custom_call.1} parent=1 // pred_check
      _
    $region3: #{tpu_custom_call.1} parent=1 // pred_check_branch
      %12 = sbr.rel (0) target = $region5
    $region4: #{tpu_custom_call.1} parent=1 // pred_region
      _
    $region5: #{tpu_custom_call.1} parent=1 // pred_fallthru
      _
    // Predicated region
    $region6: #{tpu_custom_call.1} parent=1 // pred_check
      _
    $region7: #{tpu_custom_call.1} parent=1 // pred_check_branch
      %14 = sbr.rel (0) target = $region9
    $region8: #{tpu_custom_call.1} parent=1 // pred_region
      _
    $region9: #{tpu_custom_call.1} parent=1 // pred_fallthru
      _
    // Predicated region
    $region10: #{tpu_custom_call.1} parent=1 // pred_check
      _
    $region11: #{tpu_custom_call.1} parent=1 // pred_check_branch
      %16 = sbr.rel (0) target = $region13
    $region12: #{tpu_custom_call.1} parent=1 // pred_region
      _
    $region13: #{tpu_custom_call.1} parent=1 // pred_fallthru
      _
    // Predicated region
    $region14: #{tpu_custom_call.1} parent=1 // pred_check
      _
    $region15: #{tpu_custom_call.1} parent=1 // pred_check_branch
      %18 = sbr.rel (0) target = $region17
    $region16: #{tpu_custom_call.1} parent=1 // pred_region
      _
    $region17: #{tpu_custom_call.1} parent=1 // pred_fallthru
      _
    // Predicated region
    $region18: #{tpu_custom_call.1} parent=1 // pred_check
      _
    $region19: #{tpu_custom_call.1} parent=1 // pred_check_branch
      %20 = sbr.rel (0) target = $region21
    $region20: #{tpu_custom_call.1} parent=1 // pred_region
      _
    $region21: #{tpu_custom_call.1} parent=1 // pred_fallthru
      _
    %v21 = vld [vmem:[%s0] sm:$0xff]
    %v22 = vld [vmem:[%s0 + $0x8] sm:$0xff]
    %v23 = vrot.slane %v21, 4
    %v24 = vadd.f32 %v21, %v23
    %v25 = vrot.slane %v24, 2
    %v26 = vadd.f32 %v24, %v25
    %v27 = vrot.slane %v26, 1
    %v28 = vadd.f32 %v26, %v27
    %v29 = vrot.slane %v22, 4
    %v30 = vadd.f32 %v22, %v29
    %v31 = vrot.slane %v30, 2
    %v32 = vadd.f32 %v30, %v31
    %v33 = vrot.slane %v32, 1
    %v34 = vadd.f32 %v32, %v33
    %v35 = vmul.f32 %v28, 0.125
    %v36 = vmul.f32 %v34, 0.125
    %v37 = vld [vmem:[%s1] sm:$0xff]
    %v38 = vld [vmem:[%s1 + $0x8] sm:$0xff]
    %v39 = vld [vmem:[%s1 + $0x10] sm:$0xff]
    %v40 = vld [vmem:[%s1 + $0x18] sm:$0xff]
    %v41 = vld [vmem:[%s1 + $0x20] sm:$0xff]
    %v42 = vld [vmem:[%s1 + $0x28] sm:$0xff]
    %v43 = vld [vmem:[%s1 + $0x30] sm:$0xff]
    %v44 = vld [vmem:[%s1 + $0x38] sm:$0xff]
    %v45 = vld [vmem:[%s1 + $0x40] sm:$0xff]
    %v46 = vld [vmem:[%s1 + $0x48] sm:$0xff]
    %v47 = vld [vmem:[%s1 + $0x50] sm:$0xff]
    %v48 = vld [vmem:[%s1 + $0x58] sm:$0xff]
    %v49 = vld [vmem:[%s1 + $0x60] sm:$0xff]
    %v50 = vld [vmem:[%s1 + $0x68] sm:$0xff]
    %v51 = vld [vmem:[%s1 + $0x70] sm:$0xff]
    %v52 = vld [vmem:[%s1 + $0x78] sm:$0xff]
    %v53 = vld [vmem:[%s2] sm:$0x1]
    %v55 = vperm.slane %v53, 0
    %vm59 = vcmask 1041409
    %v60 = vsel %vm59, %v36, %v35
    %62 = vmatpush.msra.mxu0 %v52
    %63 = vmatpush.msra.mxu0 %v51
    %64 = vmatpush.msra.mxu0 %v50
    %65 = vmatpush.msra.mxu0 %v49
    %66 = vmatpush.msra.mxu0 %v48
    %67 = vmatpush.msra.mxu0 %v47
    %68 = vmatpush.msra.mxu0 %v46
    %69 = vmatpush.msra.mxu0 %v45
    %70 = vmatpush.msra.mxu0 %v44
    %71 = vmatpush.msra.mxu0 %v43
    %72 = vmatpush.msra.mxu0 %v42
    %73 = vmatpush.msra.mxu0 %v41
    %74 = vmatpush.msra.mxu0 %v40
    %75 = vmatpush.msra.mxu0 %v39
    %76 = vmatpush.msra.mxu0 %v38
    %77 = vmatpush.msra.mxu0 %v37
    %78 = vmatmul.f32.gmra.mxu0 %v60
    %v79 = vpop.f32.mrf.mxu0
    %v80 = vadd.f32 %v55, %v79
    %81 = vdwg.mxu0
    %v82 = vmax.f32 %v80, 0.0
    %v83 = vld [vmem:[%s3] sm:$0xff]
    %v84 = vld [vmem:[%s4] sm:$0x1]
    %v86 = vperm.slane %v84, 0
    %vm88 = vcmask 64512
    %v90 = vsel %vm88, %v82, 0
    %92 = vmatpush.msra.mxu0 0.0
    %93 = vmatpush.msra.mxu0 0.0
    %94 = vmatpush.msra.mxu0 0.0
    %95 = vmatpush.msra.mxu0 0.0
    %96 = vmatpush.msra.mxu0 0.0
    %97 = vmatpush.msra.mxu0 0.0
    %98 = vmatpush.msra.mxu0 0.0
    %99 = vmatpush.msra.mxu0 0.0
    %100 = vmatpush.msra.mxu0 0.0
    %101 = vmatpush.msra.mxu0 0.0
    %102 = vmatpush.msra.mxu0 0.0
    %103 = vmatpush.msra.mxu0 0.0
    %104 = vmatpush.msra.mxu0 0.0
    %105 = vmatpush.msra.mxu0 0.0
    %106 = vmatpush.msra.mxu0 0.0
    %107 = vmatpush.msra.mxu0 %v83
    %108 = vmatmul.f32.gmra.mxu0 %v90
    %v109 = vpop.f32.mrf.mxu0
    %v110 = vadd.f32 %v86, %v109
    %111 = vdwg.mxu0
    %v112 = vxor.u32 %v110, 2147483648
    %v113 = vmul.f32 %v112, 1.442695
    %v114 = vpow.pop %v113
    %v115 = vadd.f32 %v114, 1.0
    %v116 = vrcp.pop %v115
    %v117 = vmul.f32 %v115, %v116
    %v118 = vsub.f32 1.0, %v117
    %v119 = vmul.f32 %v116, %v118
    %v120 = vadd.f32 %v116, %v119
    %vm121 = vweird.f32 %v115
    %vm122 = vweird.f32 %v116
    %vm123 = vmor %vm121, %vm122
    %v124 = vsel %vm123, %v116, %v120
    %v125 = vand.u32 2147483647, %v115
    %vm126 = vcmp.eq.f32.partialorder %v125, 8.507059e+37
    %v127 = vand.u32 %v115, 2147483648
    %v128 = vor.u32 1.1754944e-38, %v127
    %v129 = vsel %vm126, %v128, %v124
    %v130 = vmul.f32 1.0, %v129
    %v132 = vrot.slane %v130, 1
    %v133 = vperm.slane %v130, 0
    %v134 = vperm.slane %v132, 0
    %v137 = vmul.f32 %v21, %v133
    %v138 = vmul.f32 %v22, %v134
    %139 = vst [vmem:[#allocation2] sm:$0xff] %v137
    %140 = vst [vmem:[#allocation2 + $0x8] sm:$0xff] %v138
    // Predicated region
    $region22: #{tpu_custom_call.1} parent=1 // pred_check
      _
    $region23: #{tpu_custom_call.1} parent=1 // pred_check_branch
      %142 = sbr.rel (0) target = $region25
    $region24: #{tpu_custom_call.1} parent=1 // pred_region
      %144 = vsyncadd [#allocation3], 0
      %s145 = sshll.u32 [#allocation2], 4
      %s146 = int_to_ptr.vmem [resolvable:$true] %s145
      %s147 = sshll.u32 %s5, 4
      %s148 = int_to_ptr.hbm [resolvable:$true] %s147
      %153 = dma.vmem_to_hbm [thread:$0]  %s146, 256, %s148, [#allocation3], 128, 128, 8
    $region25: #{tpu_custom_call.1} parent=1 // pred_fallthru
      _
    // Predicated region
    $region26: #{tpu_custom_call.1} parent=1 // pred_check
      _
    $region27: #{tpu_custom_call.1} parent=1 // pred_check_branch
      %155 = sbr.rel (0) target = $region29
    $region28: #{tpu_custom_call.1} parent=1 // pred_region
      %157 = dma.done [#allocation3], 256
    $region29: #{tpu_custom_call.1} parent=1 // pred_fallthru
      _
    %158 = vsyncpa [#allocation3], 1

</llo_original>
